<compile_context>
chip_gen: v5e
topology: v5e:2x2
jax: 0.10.0
libtpu: 0.0.40
codegen_flags: <defaults>
</compile_context>

<pallas_src>
import functools

import jax
import jax.numpy as jnp
from jax.experimental import pallas as pl
from jax.experimental.pallas import tpu as pltpu


def _round_up(x, m):
    return ((x + m - 1) // m) * m


def affine_coupling_kernel(first_ref, second_ref, *refs, num_trunk,
                           fused_final, mask_config, reverse, eps,
                           exact_parity, use_bf16):
    # refs = (W0, b0, ..., W_{T-1}, b_{T-1},
    #         [W_last, b_last]  if fused_final else  [W_s, b_s, W_t, b_t],
    #         out_ref, delta_ref)
    n_w = 2 * num_trunk + (2 if fused_final else 4)
    w_refs = refs[:n_w]
    out_ref = refs[n_w]
    delta_ref = refs[n_w + 1]

    op_dtype = jnp.bfloat16 if use_bf16 else jnp.float32

    # ---- MLP trunk: (Linear + ReLU) x num_trunk ------------------------------
    # Matmul operands in op_dtype (bf16 is the native MXU input type on
    # v5e/v6e/v7x); accumulation, bias add, ReLU and all transcendentals stay
    # in f32 (v5e has no bf16 VPU/EUP).
    h = second_ref[...].astype(op_dtype)
    for li in range(num_trunk):
        w = w_refs[2 * li][...]
        b = w_refs[2 * li + 1][...]                      # (1, mid_p) f32
        z = jnp.dot(h, w, preferred_element_type=jnp.float32) + b
        h = jnp.maximum(z, 0.0).astype(op_dtype)

    # ---- final Linear + Sigmoid ----------------------------------------------
    base = 2 * num_trunk
    if fused_final:
        w_last = w_refs[base][...]
        b_last = w_refs[base + 1][...]
        t = jax.nn.sigmoid(
            jnp.dot(h, w_last, preferred_element_type=jnp.float32) + b_last)
        half = t.shape[-1] // 2
        t_scale = t[:, :half]
        shift = t[:, half:]
    else:
        w_s = w_refs[base][...]
        b_s = w_refs[base + 1][...]
        w_t = w_refs[base + 2][...]
        b_t = w_refs[base + 3][...]
        t_scale = jax.nn.sigmoid(
            jnp.dot(h, w_s, preferred_element_type=jnp.float32) + b_s)
        shift = jax.nn.sigmoid(
            jnp.dot(h, w_t, preferred_element_type=jnp.float32) + b_t)
        half = t_scale.shape[-1]

    # ---- log-det term ---------------------------------------------------------
    if exact_parity:
        scale = jnp.exp(t_scale)
        log_term = jnp.log(scale + eps)      # bit-parity with the reference
    else:
        log_term = t_scale                   # log(exp(t)); drops +eps (<=1e-5)
    log_det = jnp.sum(log_term, axis=-1, keepdims=True)

    # ---- affine transform (read `first` late to shrink its live range) -------
    first = first_ref[...].astype(jnp.float32)
    if reverse:
        transformed = (first - shift) * jnp.exp(-t_scale)   # mul, not divide
        delta_ref[...] = -log_det
    else:
        scale_fwd = scale if exact_parity else jnp.exp(t_scale)
        transformed = first * scale_fwd + shift
        delta_ref[...] = log_det

    # ---- write the FULL output row (fused concat, caller's dtype) ------------
    transformed = transformed.astype(out_ref.dtype)
    kept = second_ref[...].astype(out_ref.dtype)
    if mask_config:
        out_ref[:, :half] = transformed
        out_ref[:, half:] = kept
    else:
        out_ref[:, :half] = kept
        out_ref[:, half:] = transformed


def affine_coupling_forward(x, log_det_J, params, *, mask_config,
                            reverse=False, eps=1e-5, block_b=None,
                            use_bf16=True, exact_parity=True,
                            lane_multiple=128):
    """NICE AffineCoupling.forward as a Pallas TPU kernel.

    params: list of (W, b) with W shaped [in_features, out_features]
    (the transpose of torch's nn.Linear.weight):
      (half -> mid), hidden x (mid -> mid), (mid -> 2*half)
    matching construct_nn_module(half, mid, hidden, affine=True).
    lane_multiple: hidden-width lane padding (128 works everywhere; 256 can
    help on the 256-wide MXUs of v6e/v7x).
    """
    B, D = x.shape
    half = D // 2
    num_trunk = len(params) - 1               # (hidden + 1) Linear+ReLU layers
    mid = params[0][0].shape[1]
    mid_p = _round_up(mid, lane_multiple)     # lane-dense hidden width
    w_dtype = jnp.bfloat16 if use_bf16 else jnp.float32

    # Split x into transformed / pass-through halves in the caller's dtype.
    if mask_config:
        first_in, kept = x[:, :half], x[:, half:]
    else:
        kept, first_in = x[:, :half], x[:, half:]

    # ---- batch tiling ---------------------------------------------------------
    if block_b is None:
        blk = min(512, B)                     # big tiles: ~0.35us per grid step
        if B >= 16:
            blk = min(blk, pl.cdiv(B, 2))     # keep >= 2 grid steps (2 TCs/chip)
    else:
        blk = min(block_b, B)
    blk = max(8, (blk // 8) * 8)              # sublane-aligned batch block
    grid_b = pl.cdiv(B, blk)
    Bp = grid_b * blk
    if Bp != B:
        pad = ((0, Bp - B), (0, 0))
        first_in = jnp.pad(first_in, pad)
        kept = jnp.pad(kept, pad)

    # ---- weights: zero-pad `mid` to a lane multiple; matmul operands bf16 ----
    flat = []
    for li, (W, b) in enumerate(params[:-1]):
        W = W.astype(jnp.float32)
        b = b.astype(jnp.float32)
        in_pad = (mid_p - W.shape[0]) if li > 0 else 0
        out_pad = mid_p - W.shape[1]
        W = jnp.pad(W, ((0, in_pad), (0, out_pad)))
        b = jnp.pad(b, ((0, out_pad),))
        flat.append(W.astype(w_dtype))
        flat.append(b.reshape(1, -1))                      # biases stay f32
    W_last, b_last = params[-1]
    W_last = jnp.pad(W_last.astype(jnp.float32),
                     ((0, mid_p - W_last.shape[0]), (0, 0)))
    b_last = b_last.reshape(1, -1).astype(jnp.float32)
    # Fuse scale/shift columns into one MXU pass when they fit in 128 lanes (or
    # half is 128-aligned); otherwise pre-split so the kernel never slices at a
    # misaligned lane boundary.
    fused_final = (2 * half <= 128) or (half % 128 == 0)
    if fused_final:
        flat += [W_last.astype(w_dtype), b_last]
    else:
        flat += [W_last[:, :half].astype(w_dtype), b_last[:, :half],
                 W_last[:, half:].astype(w_dtype), b_last[:, half:]]

    kernel = functools.partial(
        affine_coupling_kernel, num_trunk=num_trunk, fused_final=fused_final,
        mask_config=bool(mask_config), reverse=reverse, eps=eps,
        exact_parity=exact_parity, use_bf16=use_bf16)

    x_spec = pl.BlockSpec((blk, half), lambda i: (i, 0))
    # Weights/biases: untiled and resident in VMEM for the whole grid
    # (single buffer, one DMA total -- not re-fetched / double-buffered).
    w_specs = [pl.BlockSpec(memory_space=pltpu.MemorySpace.VMEM) for _ in flat]
    out_specs = (pl.BlockSpec((blk, D), lambda i: (i, 0)),
                 pl.BlockSpec((blk, 1), lambda i: (i, 0)))

    # ---- derived cost / VMEM budget -------------------------------------------
    weight_bytes = sum(int(w.size) * w.dtype.itemsize for w in flat)
    itm = x.dtype.itemsize
    io_bytes = 2 * 2 * blk * half * itm + 2 * (blk * D * itm + blk * 4)
    act_bytes = 4 * blk * mid_p * 4                        # h/z temporaries
    vmem_bytes = int(1.25 * (weight_bytes + io_bytes + act_bytes)) + (2 << 20)
    # v7x has 64 MiB/TC, v5e/v6e 128 MiB; derive the budget, don't hardcode.
    vmem_limit = min(max(vmem_bytes, 32 << 20), 112 << 20)

    flops = 2 * Bp * (half * mid_p + (num_trunk - 1) * mid_p * mid_p
                      + mid_p * 2 * half)
    transcendentals = Bp * 4 * half
    bytes_accessed = itm * (2 * Bp * half + Bp * D) + 4 * Bp + weight_bytes

    out_p, delta_p = pl.pallas_call(
        kernel,
        out_shape=(jax.ShapeDtypeStruct((Bp, D), x.dtype),
                   jax.ShapeDtypeStruct((Bp, 1), jnp.float32)),
        grid=(grid_b,),
        in_specs=[x_spec, x_spec] + w_specs,
        out_specs=out_specs,
        compiler_params=pltpu.CompilerParams(
            dimension_semantics=("parallel",),
            vmem_limit_bytes=vmem_limit),
        cost_estimate=pl.CostEstimate(flops=flops,
                                      transcendentals=transcendentals,
                                      bytes_accessed=bytes_accessed),
    )(first_in, kept, *flat)

    out = out_p[:B]
    delta = delta_p[:B, 0]
    return out, (log_det_J + delta).astype(log_det_J.dtype)


def reference_forward(x, log_det_J, params, *, mask_config, reverse=False,
                      eps=1e-5):
    """Pure-JAX mirror of the PyTorch AffineCoupling.forward (f32 math)."""
    xf = x.astype(jnp.float32)
    half = xf.shape[1] // 2
    if mask_config:
        first, second = xf[:, :half], xf[:, half:]
    else:
        second, first = xf[:, :half], xf[:, half:]
    h = second
    for W, b in params[:-1]:
        h = jnp.maximum(jnp.dot(h, W, precision="highest") + b, 0.0)
    W, b = params[-1]
    t = jax.nn.sigmoid(jnp.dot(h, W, precision="highest") + b)
    scale = jnp.exp(t[:, :half])
    shift = t[:, half:]
    if reverse:
        transformed = (first - shift) / scale
        ld = log_det_J - jnp.sum(jnp.log(scale + eps), axis=-1)
    else:
        transformed = first * scale + shift
        ld = log_det_J + jnp.sum(jnp.log(scale + eps), axis=-1)
    if mask_config:
        out = jnp.concatenate([transformed, second], axis=1)
    else:
        out = jnp.concatenate([second, transformed], axis=1)
    return out, ld


def init_params(key, in_out_dim, mid_dim, hidden):
    """Deterministic init of the coupling MLP (shapes match the nn.Linear stack)."""
    half = in_out_dim // 2
    dims = [half] + [mid_dim] * (hidden + 1) + [half * 2]
    params = []
    for i in range(len(dims) - 1):
        key, kw, kb = jax.random.split(key, 3)
        bound = 1.0 / jnp.sqrt(dims[i])
        W = jax.random.uniform(kw, (dims[i], dims[i + 1]),
                               minval=-bound, maxval=bound, dtype=jnp.float32)
        b = jax.random.uniform(kb, (dims[i + 1],),
                               minval=-bound, maxval=bound, dtype=jnp.float32)
        params.append((W, b))
    return params


if __name__ == "__main__":
    in_out_dim = 16    # split into two halves of 8
    mid_dim = 32
    hidden = 2

    key = jax.random.PRNGKey(0)
    kx, kld, kp = jax.random.split(key, 3)
    params = init_params(kp, in_out_dim, mid_dim, hidden)

    # --- Test 1: f32 matmul path, exact parity, both directions, mask=1 ------
    B = 64
    x = jax.random.normal(kx, (B, in_out_dim), dtype=jnp.float32)
    log_det_J = jax.random.normal(kld, (B,), dtype=jnp.float32)
    for reverse in (False, True):
        out_x, out_ld = affine_coupling_forward(
            x, log_det_J, params, mask_config=1, reverse=reverse,
            use_bf16=False, exact_parity=True)
        jax.block_until_ready((out_x, out_ld))
        ref_x, ref_ld = reference_forward(
            x, log_det_J, params, mask_config=1, reverse=reverse)
        assert jnp.allclose(out_x, ref_x, atol=2e-2, rtol=2e-2), "f32 out mismatch"
        assert jnp.allclose(out_ld, ref_ld, atol=2e-2, rtol=2e-2), "f32 ld mismatch"

    # --- Test 2: bf16 matmul operands, ragged batch (padding path), mask=0 ---
    B2 = 20
    kx2, kld2 = jax.random.split(kx)
    x2 = jax.random.normal(kx2, (B2, in_out_dim), dtype=jnp.float32)
    ld2 = jax.random.normal(kld2, (B2,), dtype=jnp.float32)
    out_x2, out_ld2 = affine_coupling_forward(
        x2, ld2, params, mask_config=0, reverse=False,
        use_bf16=True, exact_parity=False)
    jax.block_until_ready((out_x2, out_ld2))
    ref_x2, ref_ld2 = reference_forward(
        x2, ld2, params, mask_config=0, reverse=False)
    assert jnp.allclose(out_x2, ref_x2, atol=5e-2, rtol=5e-2), "bf16 out mismatch"
    assert jnp.allclose(out_ld2, ref_ld2, atol=5e-2, rtol=5e-2), "bf16 ld mismatch"

    # --- Test 3: native bf16 I/O (no wrapper up/down-casts) -------------------
    x3 = x.astype(jnp.bfloat16)
    out_x3, out_ld3 = affine_coupling_forward(
        x3, log_det_J, params, mask_config=1, reverse=True, use_bf16=True)
    jax.block_until_ready((out_x3, out_ld3))
    assert out_x3.dtype == jnp.bfloat16
    ref_x3, ref_ld3 = reference_forward(
        x3, log_det_J, params, mask_config=1, reverse=True)
    assert jnp.allclose(out_x3.astype(jnp.float32), ref_x3.astype(jnp.float32),
                        atol=1e-1, rtol=1e-1), "bf16-io out mismatch"
    assert jnp.allclose(out_ld3, ref_ld3, atol=1e-1, rtol=1e-1), "bf16-io ld mismatch"

    print("KERNEL_OK")
</pallas_src>

<mosaic_0001>
module attributes {stable_mosaic.version = 11 : i64} {
  func.func @affine_coupling_kernel(%arg0: i32, %arg1: memref<32x8xf32, #tpu.memory_space<vmem>>, %arg2: memref<32x8xf32, #tpu.memory_space<vmem>>, %arg3: memref<8x128xf32, #tpu.memory_space<vmem>>, %arg4: memref<1x128xf32, #tpu.memory_space<vmem>>, %arg5: memref<128x128xf32, #tpu.memory_space<vmem>>, %arg6: memref<1x128xf32, #tpu.memory_space<vmem>>, %arg7: memref<128x128xf32, #tpu.memory_space<vmem>>, %arg8: memref<1x128xf32, #tpu.memory_space<vmem>>, %arg9: memref<128x16xf32, #tpu.memory_space<vmem>>, %arg10: memref<1x16xf32, #tpu.memory_space<vmem>>, %arg11: memref<32x16xf32, #tpu.memory_space<vmem>>, %arg12: memref<32x1xf32, #tpu.memory_space<vmem>>) attributes {dimension_semantics = [#tpu.dimension_semantics<parallel>], iteration_bounds = array<i64: 2>, scalar_prefetch = 0 : i64, scratch_operands = 0 : i64, tpu.core_type = #tpu.core_type<tc>, window_params = [{transform_indices = @transform_0, window_bounds = array<i64: 32, 8>}, {transform_indices = @transform_1, window_bounds = array<i64: 32, 8>}, {pipeline_mode = #tpu.pipeline_mode<synchronous>, transform_indices = @transform_2, window_bounds = array<i64: 8, 128>}, {pipeline_mode = #tpu.pipeline_mode<synchronous>, transform_indices = @transform_3, window_bounds = array<i64: 1, 128>}, {pipeline_mode = #tpu.pipeline_mode<synchronous>, transform_indices = @transform_4, window_bounds = array<i64: 128, 128>}, {pipeline_mode = #tpu.pipeline_mode<synchronous>, transform_indices = @transform_5, window_bounds = array<i64: 1, 128>}, {pipeline_mode = #tpu.pipeline_mode<synchronous>, transform_indices = @transform_6, window_bounds = array<i64: 128, 128>}, {pipeline_mode = #tpu.pipeline_mode<synchronous>, transform_indices = @transform_7, window_bounds = array<i64: 1, 128>}, {pipeline_mode = #tpu.pipeline_mode<synchronous>, transform_indices = @transform_8, window_bounds = array<i64: 128, 16>}, {pipeline_mode = #tpu.pipeline_mode<synchronous>, transform_indices = @transform_9, window_bounds = array<i64: 1, 16>}, {transform_indices = @transform_10, window_bounds = array<i64: 32, 16>}, {transform_indices = @transform_11, window_bounds = array<i64: 32, 1>}]} {
    %c0 = arith.constant 0 : index
    %c0_0 = arith.constant 0 : index
    %0 = vector.load %arg2[%c0, %c0_0] : memref<32x8xf32, #tpu.memory_space<vmem>>, vector<32x8xf32>
    %c0_1 = arith.constant 0 : index
    %c0_2 = arith.constant 0 : index
    %1 = vector.load %arg3[%c0_1, %c0_2] : memref<8x128xf32, #tpu.memory_space<vmem>>, vector<8x128xf32>
    %c0_3 = arith.constant 0 : index
    %c0_4 = arith.constant 0 : index
    %2 = vector.load %arg4[%c0_3, %c0_4] : memref<1x128xf32, #tpu.memory_space<vmem>>, vector<1x128xf32>
    %cst = arith.constant dense<0.000000e+00> : vector<32x128xf32>
    %3 = tpu.matmul %0, %1, %cst {dimension_numbers = #tpu.dot_dimension_numbers<[1], [0], [0], [1], [0, 0, 1, 1], [], []>} : vector<32x8xf32>, vector<8x128xf32>, vector<32x128xf32> -> vector<32x128xf32>
    %4 = vector.broadcast %2 : vector<1x128xf32> to vector<32x128xf32>
    %5 = arith.addf %3, %4 : vector<32x128xf32>
    %cst_5 = arith.constant 0.000000e+00 : f32
    %6 = vector.broadcast %cst_5 : f32 to vector<32x128xf32>
    %7 = arith.maximumf %5, %6 : vector<32x128xf32>
    %c0_6 = arith.constant 0 : index
    %c0_7 = arith.constant 0 : index
    %8 = vector.load %arg5[%c0_6, %c0_7] : memref<128x128xf32, #tpu.memory_space<vmem>>, vector<128x128xf32>
    %c0_8 = arith.constant 0 : index
    %c0_9 = arith.constant 0 : index
    %9 = vector.load %arg6[%c0_8, %c0_9] : memref<1x128xf32, #tpu.memory_space<vmem>>, vector<1x128xf32>
    %cst_10 = arith.constant dense<0.000000e+00> : vector<32x128xf32>
    %10 = tpu.matmul %7, %8, %cst_10 {dimension_numbers = #tpu.dot_dimension_numbers<[1], [0], [0], [1], [0, 0, 1, 1], [], []>} : vector<32x128xf32>, vector<128x128xf32>, vector<32x128xf32> -> vector<32x128xf32>
    %11 = vector.broadcast %9 : vector<1x128xf32> to vector<32x128xf32>
    %12 = arith.addf %10, %11 : vector<32x128xf32>
    %cst_11 = arith.constant 0.000000e+00 : f32
    %13 = vector.broadcast %cst_11 : f32 to vector<32x128xf32>
    %14 = arith.maximumf %12, %13 : vector<32x128xf32>
    %c0_12 = arith.constant 0 : index
    %c0_13 = arith.constant 0 : index
    %15 = vector.load %arg7[%c0_12, %c0_13] : memref<128x128xf32, #tpu.memory_space<vmem>>, vector<128x128xf32>
    %c0_14 = arith.constant 0 : index
    %c0_15 = arith.constant 0 : index
    %16 = vector.load %arg8[%c0_14, %c0_15] : memref<1x128xf32, #tpu.memory_space<vmem>>, vector<1x128xf32>
    %cst_16 = arith.constant dense<0.000000e+00> : vector<32x128xf32>
    %17 = tpu.matmul %14, %15, %cst_16 {dimension_numbers = #tpu.dot_dimension_numbers<[1], [0], [0], [1], [0, 0, 1, 1], [], []>} : vector<32x128xf32>, vector<128x128xf32>, vector<32x128xf32> -> vector<32x128xf32>
    %18 = vector.broadcast %16 : vector<1x128xf32> to vector<32x128xf32>
    %19 = arith.addf %17, %18 : vector<32x128xf32>
    %cst_17 = arith.constant 0.000000e+00 : f32
    %20 = vector.broadcast %cst_17 : f32 to vector<32x128xf32>
    %21 = arith.maximumf %19, %20 : vector<32x128xf32>
    %c0_18 = arith.constant 0 : index
    %c0_19 = arith.constant 0 : index
    %22 = vector.load %arg9[%c0_18, %c0_19] : memref<128x16xf32, #tpu.memory_space<vmem>>, vector<128x16xf32>
    %c0_20 = arith.constant 0 : index
    %c0_21 = arith.constant 0 : index
    %23 = vector.load %arg10[%c0_20, %c0_21] : memref<1x16xf32, #tpu.memory_space<vmem>>, vector<1x16xf32>
    %cst_22 = arith.constant dense<0.000000e+00> : vector<32x16xf32>
    %24 = tpu.matmul %21, %22, %cst_22 {dimension_numbers = #tpu.dot_dimension_numbers<[1], [0], [0], [1], [0, 0, 1, 1], [], []>} : vector<32x128xf32>, vector<128x16xf32>, vector<32x16xf32> -> vector<32x16xf32>
    %25 = vector.broadcast %23 : vector<1x16xf32> to vector<32x16xf32>
    %26 = arith.addf %24, %25 : vector<32x16xf32>
    %27 = arith.negf %26 : vector<32x16xf32>
    %28 = math.exp %27 : vector<32x16xf32>
    %cst_23 = arith.constant 1.000000e+00 : f32
    %29 = vector.broadcast %cst_23 : f32 to vector<32x16xf32>
    %30 = arith.addf %29, %28 : vector<32x16xf32>
    %31 = arith.divf %29, %30 : vector<32x16xf32>
    %32 = vector.extract_strided_slice %31 {offsets = [0, 0], sizes = [32, 8], strides = [1, 1]} : vector<32x16xf32> to vector<32x8xf32>
    %33 = vector.extract_strided_slice %31 {offsets = [0, 8], sizes = [32, 8], strides = [1, 1]} : vector<32x16xf32> to vector<32x8xf32>
    %34 = math.exp %32 : vector<32x8xf32>
    %cst_24 = arith.constant 9.99999974E-6 : f32
    %35 = vector.broadcast %cst_24 : f32 to vector<32x8xf32>
    %36 = arith.addf %34, %35 : vector<32x8xf32>
    %37 = math.log %36 : vector<32x8xf32>
    %cst_25 = arith.constant dense<0.000000e+00> : vector<32xf32>
    %38 = vector.multi_reduction <add>, %37, %cst_25 [1] : vector<32x8xf32> to vector<32xf32>
    %39 = vector.shape_cast %38 : vector<32xf32> to vector<32x1xf32>
    %c0_26 = arith.constant 0 : index
    %c0_27 = arith.constant 0 : index
    %40 = vector.load %arg1[%c0_26, %c0_27] : memref<32x8xf32, #tpu.memory_space<vmem>>, vector<32x8xf32>
    %41 = arith.mulf %40, %34 : vector<32x8xf32>
    %42 = arith.addf %41, %33 : vector<32x8xf32>
    %c0_28 = arith.constant 0 : index
    %c0_29 = arith.constant 0 : index
    %43 = vector.load %arg12[%c0_28, %c0_29] : memref<32x1xf32, #tpu.memory_space<vmem>>, vector<32x1xf32>
    tpu.vector_store %arg12[%c0_28, %c0_29], %39 {strides = array<i32>} : memref<32x1xf32, #tpu.memory_space<vmem>>, vector<32x1xf32>,
    %c0_30 = arith.constant 0 : index
    %c0_31 = arith.constant 0 : index
    %44 = vector.load %arg2[%c0_30, %c0_31] : memref<32x8xf32, #tpu.memory_space<vmem>>, vector<32x8xf32>
    %c0_32 = arith.constant 0 : index
    %c0_33 = arith.constant 0 : index
    %45 = vector.load %arg11[%c0_32, %c0_33] : memref<32x16xf32, #tpu.memory_space<vmem>>, vector<32x8xf32>
    tpu.vector_store %arg11[%c0_32, %c0_33], %42 {strides = array<i32>} : memref<32x16xf32, #tpu.memory_space<vmem>>, vector<32x8xf32>,
    %c0_34 = arith.constant 0 : index
    %c8 = arith.constant 8 : index
    %46 = vector.load %arg11[%c0_34, %c8] : memref<32x16xf32, #tpu.memory_space<vmem>>, vector<32x8xf32>
    tpu.vector_store %arg11[%c0_34, %c8], %44 {strides = array<i32>} : memref<32x16xf32, #tpu.memory_space<vmem>>, vector<32x8xf32>,
    return
  }
  func.func @transform_0(%arg0: i32) -> (i32, i32) {
    %c0_i32 = arith.constant 0 : i32
    %c0_i32_0 = arith.constant 0 : i32
    return %arg0, %c0_i32 : i32, i32
  }
  func.func @transform_1(%arg0: i32) -> (i32, i32) {
    %c0_i32 = arith.constant 0 : i32
    %c0_i32_0 = arith.constant 0 : i32
    return %arg0, %c0_i32 : i32, i32
  }
  func.func @transform_2(%arg0: i32) -> (i32, i32) {
    %c0_i32 = arith.constant 0 : i32
    %c0_i32_0 = arith.constant 0 : i32
    %c0_i32_1 = arith.constant 0 : i32
    return %c0_i32, %c0_i32_0 : i32, i32
  }
  func.func @transform_3(%arg0: i32) -> (i32, i32) {
    %c0_i32 = arith.constant 0 : i32
    %c0_i32_0 = arith.constant 0 : i32
    %c0_i32_1 = arith.constant 0 : i32
    return %c0_i32, %c0_i32_0 : i32, i32
  }
  func.func @transform_4(%arg0: i32) -> (i32, i32) {
    %c0_i32 = arith.constant 0 : i32
    %c0_i32_0 = arith.constant 0 : i32
    %c0_i32_1 = arith.constant 0 : i32
    return %c0_i32, %c0_i32_0 : i32, i32
  }
  func.func @transform_5(%arg0: i32) -> (i32, i32) {
    %c0_i32 = arith.constant 0 : i32
    %c0_i32_0 = arith.constant 0 : i32
    %c0_i32_1 = arith.constant 0 : i32
    return %c0_i32, %c0_i32_0 : i32, i32
  }
  func.func @transform_6(%arg0: i32) -> (i32, i32) {
    %c0_i32 = arith.constant 0 : i32
    %c0_i32_0 = arith.constant 0 : i32
    %c0_i32_1 = arith.constant 0 : i32
    return %c0_i32, %c0_i32_0 : i32, i32
  }
  func.func @transform_7(%arg0: i32) -> (i32, i32) {
    %c0_i32 = arith.constant 0 : i32
    %c0_i32_0 = arith.constant 0 : i32
    %c0_i32_1 = arith.constant 0 : i32
    return %c0_i32, %c0_i32_0 : i32, i32
  }
  func.func @transform_8(%arg0: i32) -> (i32, i32) {
    %c0_i32 = arith.constant 0 : i32
    %c0_i32_0 = arith.constant 0 : i32
    %c0_i32_1 = arith.constant 0 : i32
    return %c0_i32, %c0_i32_0 : i32, i32
  }
  func.func @transform_9(%arg0: i32) -> (i32, i32) {
    %c0_i32 = arith.constant 0 : i32
    %c0_i32_0 = arith.constant 0 : i32
    %c0_i32_1 = arith.constant 0 : i32
    return %c0_i32, %c0_i32_0 : i32, i32
  }
  func.func @transform_10(%arg0: i32) -> (i32, i32) {
    %c0_i32 = arith.constant 0 : i32
    %c0_i32_0 = arith.constant 0 : i32
    return %arg0, %c0_i32 : i32, i32
  }
  func.func @transform_11(%arg0: i32) -> (i32, i32) {
    %c0_i32 = arith.constant 0 : i32
    %c0_i32_0 = arith.constant 0 : i32
    return %arg0, %c0_i32 : i32, i32
  }
}

</mosaic_0001>

<llo_original>
// kernel: tpu_custom_call.1
$region0: #{tpu_custom_call.1}
  #allocation0 [shape = 'u32[]', space=smem, size = 0x4, offset = 0x4, fixed_abs, tag = 'smem constant byte address 0x4 - core index']
  #allocation1 [shape = 'u32[72,128]{1,0:T(1,128)}', space=vmem, size = 0x9000, scoped, tag = 'internal scratch']
  %s0 = inlined_call_operand.vmem [shape: f32[64,8], index: 0, kind: input, shape index: {}]
  %s1 = inlined_call_operand.vmem [shape: f32[64,8], index: 1, kind: input, shape index: {}]
  %s2 = inlined_call_operand.vmem [shape: f32[8,128], index: 2, kind: input, shape index: {}]
  %s3 = inlined_call_operand.vmem [shape: f32[1,128], index: 3, kind: input, shape index: {}]
  %s4 = inlined_call_operand.vmem [shape: f32[128,128], index: 4, kind: input, shape index: {}]
  %s5 = inlined_call_operand.vmem [shape: f32[1,128], index: 5, kind: input, shape index: {}]
  %s6 = inlined_call_operand.vmem [shape: f32[128,128], index: 6, kind: input, shape index: {}]
  %s7 = inlined_call_operand.vmem [shape: f32[1,128], index: 7, kind: input, shape index: {}]
  %s8 = inlined_call_operand.vmem [shape: f32[128,16], index: 8, kind: input, shape index: {}]
  %s9 = inlined_call_operand.vmem [shape: f32[1,16], index: 9, kind: input, shape index: {}]
  %s10 = inlined_call_operand.vmem [shape: f32[64,16], index: 10, kind: output, shape index: {0}]
  %s11 = inlined_call_operand.vmem [shape: f32[64,1], index: 11, kind: output, shape index: {1}]
  %12 = xla_tuple %s10, %s11
  %s13 = sld [smem:[#allocation0]]
  $region81: #{tpu_custom_call.1} parent=0
    _
  %s15 = ssub.s32 1, %s13
  %s16 = scalar_select 0, %s15, %s13
  loop: start=0, step=1, limit=4
  $region2: #{tpu_custom_call.1} parent=0 // loop_pre_header
    _
  $region3: #{tpu_custom_call.1} parent=0 // loop_header
    %s18 = sphi 0, %s22
    %p19 = scmp.ge.s32.totalorder %s18, 4
    %s28 = sphi 0, %s30
    %s31 = sphi 0, %s28
    %s32 = sphi 0, %s31
    %s48 = sphi 0, %s32
    %s54 = sphi 0, %s56
    %s57 = sphi 0, %s54
    %s58 = sphi 0, %s57
    %s74 = sphi 0, %s58
    %s78 = sphi 0, %s78
    %s80 = sphi 0, %s78
    %s81 = sphi 0, %s80
    %s95 = sphi 0, %s81
    %s99 = sphi 0, %s99
    %s101 = sphi 0, %s99
    %s102 = sphi 0, %s101
    %s116 = sphi 0, %s102
    %s120 = sphi 0, %s120
    %s122 = sphi 0, %s120
    %s123 = sphi 0, %s122
    %s137 = sphi 0, %s123
    %s141 = sphi 0, %s141
    %s143 = sphi 0, %s141
    %s144 = sphi 0, %s143
    %s158 = sphi 0, %s144
    %s162 = sphi 0, %s162
    %s164 = sphi 0, %s162
    %s165 = sphi 0, %s164
    %s179 = sphi 0, %s165
    %s183 = sphi 0, %s183
    %s185 = sphi 0, %s183
    %s186 = sphi 0, %s185
    %s200 = sphi 0, %s186
    %s204 = sphi 0, %s204
    %s206 = sphi 0, %s204
    %s207 = sphi 0, %s206
    %s221 = sphi 0, %s207
    %s225 = sphi 0, %s225
    %s227 = sphi 0, %s225
    %s228 = sphi 0, %s227
    %s242 = sphi 0, %s228
    %s248 = sphi 0, %s250
    %s251 = sphi 0, %s248
    %s252 = sphi 0, %s251
    %s268 = sphi 0, %s252
    %s274 = sphi 0, %s276
    %s277 = sphi 0, %s274
    %s278 = sphi 0, %s277
    %s294 = sphi 0, %s278
  $region4: #{tpu_custom_call.1} parent=0 // loop_header_branch
    %21 = sbr.rel (%p19) target = $region8
  $region5: #{tpu_custom_call.1} parent=0 // loop_body
    %s23 = ssub.s32 %s18, 1
    %s24 = ssub.s32 %s18, 2
    %s25 = sadd.s32 %s18, 1
    %s26 = ssub.s32 %s18, %s25
    %p27 = scmp.eq.s32.totalorder %s26, 0
    %s29 = sadd.s32 %s28, 1
    %s30 = scalar_select %p27, %s28, %s29
    %p33 = pneg %p27
    %p34 = scmp.eq.s32.totalorder %s18, 1
    %p35 = por %p33, %p34
    %p36 = scmp.ne.s32.totalorder %s28, %s31
    %p37 = scmp.eq.s32.totalorder %s18, 0
    %p38 = por %p36, %p37
    %p39 = scmp.ne.s32.totalorder %s28, %s31
    %p40 = scmp.eq.s32.totalorder %s23, 1
    %p41 = por %p39, %p40
    %p42 = scmp.ne.s32.totalorder %s31, %s32
    %p43 = scmp.eq.s32.totalorder %s23, 0
    %p44 = por %p42, %p43
    %p45 = scmp.ne.s32.totalorder %s31, %s32
    %p46 = scmp.eq.s32.totalorder %s24, 1
    %p47 = por %p45, %p46
    %p49 = scmp.ne.s32.totalorder %s32, %s48
    %p50 = scmp.eq.s32.totalorder %s24, 0
    %p51 = por %p49, %p50
    %s52 = ssub.s32 %s18, %s25
    %p53 = scmp.eq.s32.totalorder %s52, 0
    %s55 = sadd.s32 %s54, 1
    %s56 = scalar_select %p53, %s54, %s55
    %p59 = pneg %p53
    %p60 = scmp.eq.s32.totalorder %s18, 1
    %p61 = por %p59, %p60
    %p62 = scmp.ne.s32.totalorder %s54, %s57
    %p63 = scmp.eq.s32.totalorder %s18, 0
    %p64 = por %p62, %p63
    %p65 = scmp.ne.s32.totalorder %s54, %s57
    %p66 = scmp.eq.s32.totalorder %s23, 1
    %p67 = por %p65, %p66
    %p68 = scmp.ne.s32.totalorder %s57, %s58
    %p69 = scmp.eq.s32.totalorder %s23, 0
    %p70 = por %p68, %p69
    %p71 = scmp.ne.s32.totalorder %s57, %s58
    %p72 = scmp.eq.s32.totalorder %s24, 1
    %p73 = por %p71, %p72
    %p75 = scmp.ne.s32.totalorder %s58, %s74
    %p76 = scmp.eq.s32.totalorder %s24, 0
    %p77 = por %p75, %p76
    %s79 = sadd.s32 %s78, 1
    %p82 = scmp.eq.s32.totalorder %s18, 1
    %p83 = scmp.ne.s32.totalorder %s78, %s80
    %p84 = scmp.eq.s32.totalorder %s18, 0
    %p85 = por %p83, %p84
    %p86 = scmp.ne.s32.totalorder %s78, %s80
    %p87 = scmp.eq.s32.totalorder %s23, 1
    %p88 = por %p86, %p87
    %p89 = scmp.ne.s32.totalorder %s80, %s81
    %p90 = scmp.eq.s32.totalorder %s23, 0
    %p91 = por %p89, %p90
    %p92 = scmp.ne.s32.totalorder %s80, %s81
    %p93 = scmp.eq.s32.totalorder %s24, 1
    %p94 = por %p92, %p93
    %p96 = scmp.ne.s32.totalorder %s81, %s95
    %p97 = scmp.eq.s32.totalorder %s24, 0
    %p98 = por %p96, %p97
    %s100 = sadd.s32 %s99, 1
    %p103 = scmp.eq.s32.totalorder %s18, 1
    %p104 = scmp.ne.s32.totalorder %s99, %s101
    %p105 = scmp.eq.s32.totalorder %s18, 0
    %p106 = por %p104, %p105
    %p107 = scmp.ne.s32.totalorder %s99, %s101
    %p108 = scmp.eq.s32.totalorder %s23, 1
    %p109 = por %p107, %p108
    %p110 = scmp.ne.s32.totalorder %s101, %s102
    %p111 = scmp.eq.s32.totalorder %s23, 0
    %p112 = por %p110, %p111
    %p113 = scmp.ne.s32.totalorder %s101, %s102
    %p114 = scmp.eq.s32.totalorder %s24, 1
    %p115 = por %p113, %p114
    %p117 = scmp.ne.s32.totalorder %s102, %s116
    %p118 = scmp.eq.s32.totalorder %s24, 0
    %p119 = por %p117, %p118
    %s121 = sadd.s32 %s120, 1
    %p124 = scmp.eq.s32.totalorder %s18, 1
    %p125 = scmp.ne.s32.totalorder %s120, %s122
    %p126 = scmp.eq.s32.totalorder %s18, 0
    %p127 = por %p125, %p126
    %p128 = scmp.ne.s32.totalorder %s120, %s122
    %p129 = scmp.eq.s32.totalorder %s23, 1
    %p130 = por %p128, %p129
    %p131 = scmp.ne.s32.totalorder %s122, %s123
    %p132 = scmp.eq.s32.totalorder %s23, 0
    %p133 = por %p131, %p132
    %p134 = scmp.ne.s32.totalorder %s122, %s123
    %p135 = scmp.eq.s32.totalorder %s24, 1
    %p136 = por %p134, %p135
    %p138 = scmp.ne.s32.totalorder %s123, %s137
    %p139 = scmp.eq.s32.totalorder %s24, 0
    %p140 = por %p138, %p139
    %s142 = sadd.s32 %s141, 1
    %p145 = scmp.eq.s32.totalorder %s18, 1
    %p146 = scmp.ne.s32.totalorder %s141, %s143
    %p147 = scmp.eq.s32.totalorder %s18, 0
    %p148 = por %p146, %p147
    %p149 = scmp.ne.s32.totalorder %s141, %s143
    %p150 = scmp.eq.s32.totalorder %s23, 1
    %p151 = por %p149, %p150
    %p152 = scmp.ne.s32.totalorder %s143, %s144
    %p153 = scmp.eq.s32.totalorder %s23, 0
    %p154 = por %p152, %p153
    %p155 = scmp.ne.s32.totalorder %s143, %s144
    %p156 = scmp.eq.s32.totalorder %s24, 1
    %p157 = por %p155, %p156
    %p159 = scmp.ne.s32.totalorder %s144, %s158
    %p160 = scmp.eq.s32.totalorder %s24, 0
    %p161 = por %p159, %p160
    %s163 = sadd.s32 %s162, 1
    %p166 = scmp.eq.s32.totalorder %s18, 1
    %p167 = scmp.ne.s32.totalorder %s162, %s164
    %p168 = scmp.eq.s32.totalorder %s18, 0
    %p169 = por %p167, %p168
    %p170 = scmp.ne.s32.totalorder %s162, %s164
    %p171 = scmp.eq.s32.totalorder %s23, 1
    %p172 = por %p170, %p171
    %p173 = scmp.ne.s32.totalorder %s164, %s165
    %p174 = scmp.eq.s32.totalorder %s23, 0
    %p175 = por %p173, %p174
    %p176 = scmp.ne.s32.totalorder %s164, %s165
    %p177 = scmp.eq.s32.totalorder %s24, 1
    %p178 = por %p176, %p177
    %p180 = scmp.ne.s32.totalorder %s165, %s179
    %p181 = scmp.eq.s32.totalorder %s24, 0
    %p182 = por %p180, %p181
    %s184 = sadd.s32 %s183, 1
    %p187 = scmp.eq.s32.totalorder %s18, 1
    %p188 = scmp.ne.s32.totalorder %s183, %s185
    %p189 = scmp.eq.s32.totalorder %s18, 0
    %p190 = por %p188, %p189
    %p191 = scmp.ne.s32.totalorder %s183, %s185
    %p192 = scmp.eq.s32.totalorder %s23, 1
    %p193 = por %p191, %p192
    %p194 = scmp.ne.s32.totalorder %s185, %s186
    %p195 = scmp.eq.s32.totalorder %s23, 0
    %p196 = por %p194, %p195
    %p197 = scmp.ne.s32.totalorder %s185, %s186
    %p198 = scmp.eq.s32.totalorder %s24, 1
    %p199 = por %p197, %p198
    %p201 = scmp.ne.s32.totalorder %s186, %s200
    %p202 = scmp.eq.s32.totalorder %s24, 0
    %p203 = por %p201, %p202
    %s205 = sadd.s32 %s204, 1
    %p208 = scmp.eq.s32.totalorder %s18, 1
    %p209 = scmp.ne.s32.totalorder %s204, %s206
    %p210 = scmp.eq.s32.totalorder %s18, 0
    %p211 = por %p209, %p210
    %p212 = scmp.ne.s32.totalorder %s204, %s206
    %p213 = scmp.eq.s32.totalorder %s23, 1
    %p214 = por %p212, %p213
    %p215 = scmp.ne.s32.totalorder %s206, %s207
    %p216 = scmp.eq.s32.totalorder %s23, 0
    %p217 = por %p215, %p216
    %p218 = scmp.ne.s32.totalorder %s206, %s207
    %p219 = scmp.eq.s32.totalorder %s24, 1
    %p220 = por %p218, %p219
    %p222 = scmp.ne.s32.totalorder %s207, %s221
    %p223 = scmp.eq.s32.totalorder %s24, 0
    %p224 = por %p222, %p223
    %s226 = sadd.s32 %s225, 1
    %p229 = scmp.eq.s32.totalorder %s18, 1
    %p230 = scmp.ne.s32.totalorder %s225, %s227
    %p231 = scmp.eq.s32.totalorder %s18, 0
    %p232 = por %p230, %p231
    %p233 = scmp.ne.s32.totalorder %s225, %s227
    %p234 = scmp.eq.s32.totalorder %s23, 1
    %p235 = por %p233, %p234
    %p236 = scmp.ne.s32.totalorder %s227, %s228
    %p237 = scmp.eq.s32.totalorder %s23, 0
    %p238 = por %p236, %p237
    %p239 = scmp.ne.s32.totalorder %s227, %s228
    %p240 = scmp.eq.s32.totalorder %s24, 1
    %p241 = por %p239, %p240
    %p243 = scmp.ne.s32.totalorder %s228, %s242
    %p244 = scmp.eq.s32.totalorder %s24, 0
    %p245 = por %p243, %p244
    %s246 = ssub.s32 %s18, %s25
    %p247 = scmp.eq.s32.totalorder %s246, 0
    %s249 = sadd.s32 %s248, 1
    %s250 = scalar_select %p247, %s248, %s249
    %p253 = pneg %p247
    %p254 = scmp.eq.s32.totalorder %s18, 1
    %p255 = por %p253, %p254
    %p256 = scmp.ne.s32.totalorder %s248, %s251
    %p257 = scmp.eq.s32.totalorder %s18, 0
    %p258 = por %p256, %p257
    %p259 = scmp.ne.s32.totalorder %s248, %s251
    %p260 = scmp.eq.s32.totalorder %s23, 1
    %p261 = por %p259, %p260
    %p262 = scmp.ne.s32.totalorder %s251, %s252
    %p263 = scmp.eq.s32.totalorder %s23, 0
    %p264 = por %p262, %p263
    %p265 = scmp.ne.s32.totalorder %s251, %s252
    %p266 = scmp.eq.s32.totalorder %s24, 1
    %p267 = por %p265, %p266
    %p269 = scmp.ne.s32.totalorder %s252, %s268
    %p270 = scmp.eq.s32.totalorder %s24, 0
    %p271 = por %p269, %p270
    %s272 = ssub.s32 %s18, %s25
    %p273 = scmp.eq.s32.totalorder %s272, 0
    %s275 = sadd.s32 %s274, 1
    %s276 = scalar_select %p273, %s274, %s275
    %p279 = pneg %p273
    %p280 = scmp.eq.s32.totalorder %s18, 1
    %p281 = por %p279, %p280
    %p282 = scmp.ne.s32.totalorder %s274, %s277
    %p283 = scmp.eq.s32.totalorder %s18, 0
    %p284 = por %p282, %p283
    %p285 = scmp.ne.s32.totalorder %s274, %s277
    %p286 = scmp.eq.s32.totalorder %s23, 1
    %p287 = por %p285, %p286
    %p288 = scmp.ne.s32.totalorder %s277, %s278
    %p289 = scmp.eq.s32.totalorder %s23, 0
    %p290 = por %p288, %p289
    %p291 = scmp.ne.s32.totalorder %s277, %s278
    %p292 = scmp.eq.s32.totalorder %s24, 1
    %p293 = por %p291, %p292
    %p295 = scmp.ne.s32.totalorder %s278, %s294
    %p296 = scmp.eq.s32.totalorder %s24, 0
    %p297 = por %p295, %p296
    %p298 = scmp.le.s32.totalorder 1, %s18
    %p299 = scmp.lt.s32.totalorder %s18, 3
    %p300 = pnand %p298, %p299
    %p301 = pneg %p300
    // Predicated region
    $region9: #{tpu_custom_call.1} parent=5 // pred_check
      _
    $region10: #{tpu_custom_call.1} parent=5 // pred_check_branch
      %303 = sbr.rel (%p300) target = $region12
    $region11: #{tpu_custom_call.1} parent=5 // pred_region
      %s304 = ssub.s32 %s18, 1
      // Predicated region
      $region13: #{tpu_custom_call.1} parent=11 // pred_check
        %p305 = pneg %p91
      $region14: #{tpu_custom_call.1} parent=11 // pred_check_branch
        %307 = sbr.rel (%p305) target = $region16
      $region15: #{tpu_custom_call.1} parent=11 // pred_region
        _
      $region16: #{tpu_custom_call.1} parent=11 // pred_fallthru
        _
      // Predicated region
      $region17: #{tpu_custom_call.1} parent=11 // pred_check
        %p308 = pneg %p112
      $region18: #{tpu_custom_call.1} parent=11 // pred_check_branch
        %310 = sbr.rel (%p308) target = $region20
      $region19: #{tpu_custom_call.1} parent=11 // pred_region
        _
      $region20: #{tpu_custom_call.1} parent=11 // pred_fallthru
        _
      // Predicated region
      $region21: #{tpu_custom_call.1} parent=11 // pred_check
        %p311 = pneg %p133
      $region22: #{tpu_custom_call.1} parent=11 // pred_check_branch
        %313 = sbr.rel (%p311) target = $region24
      $region23: #{tpu_custom_call.1} parent=11 // pred_region
        _
      $region24: #{tpu_custom_call.1} parent=11 // pred_fallthru
        _
      // Predicated region
      $region25: #{tpu_custom_call.1} parent=11 // pred_check
        %p314 = pneg %p154
      $region26: #{tpu_custom_call.1} parent=11 // pred_check_branch
        %316 = sbr.rel (%p314) target = $region28
      $region27: #{tpu_custom_call.1} parent=11 // pred_region
        _
      $region28: #{tpu_custom_call.1} parent=11 // pred_fallthru
        _
      // Predicated region
      $region29: #{tpu_custom_call.1} parent=11 // pred_check
        %p317 = pneg %p175
      $region30: #{tpu_custom_call.1} parent=11 // pred_check_branch
        %319 = sbr.rel (%p317) target = $region32
      $region31: #{tpu_custom_call.1} parent=11 // pred_region
        _
      $region32: #{tpu_custom_call.1} parent=11 // pred_fallthru
        _
      // Predicated region
      $region33: #{tpu_custom_call.1} parent=11 // pred_check
        %p320 = pneg %p196
      $region34: #{tpu_custom_call.1} parent=11 // pred_check_branch
        %322 = sbr.rel (%p320) target = $region36
      $region35: #{tpu_custom_call.1} parent=11 // pred_region
        _
      $region36: #{tpu_custom_call.1} parent=11 // pred_fallthru
        _
      // Predicated region
      $region37: #{tpu_custom_call.1} parent=11 // pred_check
        %p323 = pneg %p217
      $region38: #{tpu_custom_call.1} parent=11 // pred_check_branch
        %325 = sbr.rel (%p323) target = $region40
      $region39: #{tpu_custom_call.1} parent=11 // pred_region
        _
      $region40: #{tpu_custom_call.1} parent=11 // pred_fallthru
        _
      // Predicated region
      $region41: #{tpu_custom_call.1} parent=11 // pred_check
        %p326 = pneg %p238
      $region42: #{tpu_custom_call.1} parent=11 // pred_check_branch
        %328 = sbr.rel (%p326) target = $region44
      $region43: #{tpu_custom_call.1} parent=11 // pred_region
        _
      $region44: #{tpu_custom_call.1} parent=11 // pred_fallthru
        _
    $region12: #{tpu_custom_call.1} parent=5 // pred_fallthru
      _
    %p329 = scmp.lt.s32.totalorder %s18, 2
    // Predicated region
    $region45: #{tpu_custom_call.1} parent=5 // pred_check
      %p330 = pneg %p329
    $region46: #{tpu_custom_call.1} parent=5 // pred_check_branch
      %332 = sbr.rel (%p330) target = $region48
    $region47: #{tpu_custom_call.1} parent=5 // pred_region
      // Predicated region
      $region49: #{tpu_custom_call.1} parent=47 // pred_check
        %p333 = pneg %p38
      $region50: #{tpu_custom_call.1} parent=47 // pred_check_branch
        %335 = sbr.rel (%p333) target = $region52
      $region51: #{tpu_custom_call.1} parent=47 // pred_region
        %s336 = smul.u32 4, %s18
        %p337 = scmp.lt.s32.totalorder %s336, 7
        %s338 = scalar_select %p337, %s336, 7
        %s339 = smul.addr %s338, 8
        %s340 = scalar_lea.vmem %s0, %s339
        %s341 = smul.u32 4, %s18
      $region52: #{tpu_custom_call.1} parent=47 // pred_fallthru
        _
      // Predicated region
      $region53: #{tpu_custom_call.1} parent=47 // pred_check
        %p342 = pneg %p64
      $region54: #{tpu_custom_call.1} parent=47 // pred_check_branch
        %344 = sbr.rel (%p342) target = $region56
      $region55: #{tpu_custom_call.1} parent=47 // pred_region
        %s345 = smul.u32 4, %s18
        %p346 = scmp.lt.s32.totalorder %s345, 7
        %s347 = scalar_select %p346, %s345, 7
        %s348 = smul.addr %s347, 8
        %s349 = scalar_lea.vmem %s1, %s348
        %s350 = smul.u32 4, %s18
      $region56: #{tpu_custom_call.1} parent=47 // pred_fallthru
        _
    $region48: #{tpu_custom_call.1} parent=5 // pred_fallthru
      _
    %p351 = scmp.le.s32.totalorder 1, %s18
    %p352 = scmp.lt.s32.totalorder %s18, 3
    %p353 = pnand %p351, %p352
    %p354 = pneg %p353
    // Predicated region
    $region57: #{tpu_custom_call.1} parent=5 // pred_check
      _
    $region58: #{tpu_custom_call.1} parent=5 // pred_check_branch
      %356 = sbr.rel (%p353) target = $region60
    $region59: #{tpu_custom_call.1} parent=5 // pred_region
      %s357 = ssub.s32 %s18, 1
      %s358 = smul.u32 4, %s23
      %p359 = scmp.lt.s32.totalorder %s358, 7
      %s360 = scalar_select %p359, %s358, 7
      %s361 = smul.addr %s360, 8
      %s362 = scalar_lea.vmem %s0, %s361
      %p363 = pneg %p44
      %p364 = pneg %p41
      %s365 = smul.u32 4, %s23
      %p366 = scmp.lt.s32.totalorder %s365, 7
      %s367 = scalar_select %p366, %s365, 7
      %s368 = smul.addr %s367, 8
      %s369 = scalar_lea.vmem %s1, %s368
      %p370 = pneg %p70
      %p371 = pneg %p67
      %p372 = pneg %p91
      %p373 = pneg %p88
      %p374 = pneg %p112
      %p375 = pneg %p109
      %p376 = pneg %p133
      %p377 = pneg %p130
      %p378 = pneg %p154
      %p379 = pneg %p151
      %p380 = pneg %p175
      %p381 = pneg %p172
      %p382 = pneg %p196
      %p383 = pneg %p193
      %p384 = pneg %p217
      %p385 = pneg %p214
      %p386 = pneg %p238
      %p387 = pneg %p235
      %p388 = pneg %p264
      %p389 = pneg %p261
      %s390 = smul.u32 4, %s23
      %p391 = scmp.lt.s32.totalorder %s390, 7
      %s392 = scalar_select %p391, %s390, 7
      %s393 = smul.addr %s392, 8
      %s394 = scalar_lea.vmem %s10, %s393
      %p395 = pneg %p290
      %p396 = pneg %p287
      %s397 = smul.u32 4, %s23
      %p398 = scmp.lt.s32.totalorder %s397, 7
      %s399 = scalar_select %p398, %s397, 7
      %s400 = smul.addr %s399, 8
      %s401 = scalar_lea.vmem %s11, %s400
      %s402 = smul.u32 4, %s23
      %p403 = scmp.lt.s32.totalorder %s402, 7
      %s404 = scalar_select %p403, %s402, 7
      %s405 = smul.addr %s404, 8
      %s406 = scalar_lea.vmem %s0, %s405
      %s407 = smul.u32 4, %s23
      %s408 = smul.u32 4, %s23
      %p409 = scmp.lt.s32.totalorder %s408, 7
      %s410 = scalar_select %p409, %s408, 7
      %s411 = smul.addr %s410, 8
      %s412 = scalar_lea.vmem %s1, %s411
      %s413 = smul.u32 4, %s23
      %s414 = smul.u32 4, %s23
      %p415 = scmp.lt.s32.totalorder %s414, 7
      %s416 = scalar_select %p415, %s414, 7
      %s417 = smul.addr %s416, 8
      %s418 = scalar_lea.vmem %s10, %s417
      %s419 = smul.u32 4, %s23
      %s420 = smul.u32 4, %s23
      %p421 = scmp.lt.s32.totalorder %s420, 7
      %s422 = scalar_select %p421, %s420, 7
      %s423 = smul.addr %s422, 8
      %s424 = scalar_lea.vmem %s11, %s423
      %s425 = smul.u32 4, %s23
      %v426 = vld [vmem:[%s412] sm:$0xff]
      %v427 = vld [vmem:[%s412 + $0x8] sm:$0xff]
      %v428 = vld [vmem:[%s412 + $0x10] sm:$0xff]
      %v429 = vld [vmem:[%s412 + $0x18] sm:$0xff]
      %v430 = vld [vmem:[%s2] sm:$0xff]
      %v431 = vld [vmem:[%s3] sm:$0x1]
      %v433 = vperm.slane %v431, 0
      %vm435 = vcmask 64512
      %v437 = vsel %vm435, %v426, 0
      %v440 = vsel %vm435, %v427, 0
      %v443 = vsel %vm435, %v428, 0
      %v446 = vsel %vm435, %v429, 0
      %448 = vmatpush.msra.mxu0 0.0
      %449 = vmatpush.msra.mxu0 0.0
      %450 = vmatpush.msra.mxu0 0.0
      %451 = vmatpush.msra.mxu0 0.0
      %452 = vmatpush.msra.mxu0 0.0
      %453 = vmatpush.msra.mxu0 0.0
      %454 = vmatpush.msra.mxu0 0.0
      %455 = vmatpush.msra.mxu0 0.0
      %456 = vmatpush.msra.mxu0 0.0
      %457 = vmatpush.msra.mxu0 0.0
      %458 = vmatpush.msra.mxu0 0.0
      %459 = vmatpush.msra.mxu0 0.0
      %460 = vmatpush.msra.mxu0 0.0
      %461 = vmatpush.msra.mxu0 0.0
      %462 = vmatpush.msra.mxu0 0.0
      %463 = vmatpush.msra.mxu0 %v430
      %464 = vmatmul.f32.gmra.mxu0 %v437
      %v465 = vpop.f32.mrf.mxu0
      %v466 = vadd.f32 %v433, %v465
      %467 = vmatmul.f32.gmra.mxu0 %v440
      %v468 = vpop.f32.mrf.mxu0
      %v469 = vadd.f32 %v433, %v468
      %470 = vmatmul.f32.gmra.mxu0 %v443
      %v471 = vpop.f32.mrf.mxu0
      %v472 = vadd.f32 %v433, %v471
      %473 = vmatmul.f32.gmra.mxu0 %v446
      %v474 = vpop.f32.mrf.mxu0
      %v475 = vadd.f32 %v433, %v474
      %476 = vdwg.mxu0
      %v477 = vmax.f32 %v466, 0.0
      %v478 = vmax.f32 %v469, 0.0
      %v479 = vmax.f32 %v472, 0.0
      %v480 = vmax.f32 %v475, 0.0
      %v481 = vld [vmem:[%s4] sm:$0xff]
      %v482 = vld [vmem:[%s4 + $0x8] sm:$0xff]
      %v483 = vld [vmem:[%s4 + $0x10] sm:$0xff]
      %v484 = vld [vmem:[%s4 + $0x18] sm:$0xff]
      %v485 = vld [vmem:[%s4 + $0x20] sm:$0xff]
      %v486 = vld [vmem:[%s4 + $0x28] sm:$0xff]
      %v487 = vld [vmem:[%s4 + $0x30] sm:$0xff]
      %v488 = vld [vmem:[%s4 + $0x38] sm:$0xff]
      %v489 = vld [vmem:[%s4 + $0x40] sm:$0xff]
      %v490 = vld [vmem:[%s4 + $0x48] sm:$0xff]
      %v491 = vld [vmem:[%s4 + $0x50] sm:$0xff]
      %v492 = vld [vmem:[%s4 + $0x58] sm:$0xff]
      %v493 = vld [vmem:[%s4 + $0x60] sm:$0xff]
      %v494 = vld [vmem:[%s4 + $0x68] sm:$0xff]
      %v495 = vld [vmem:[%s4 + $0x70] sm:$0xff]
      %v496 = vld [vmem:[%s4 + $0x78] sm:$0xff]
      %v497 = vld [vmem:[%s5] sm:$0x1]
      %v499 = vperm.slane %v497, 0
      %501 = vmatpush.msra.mxu0 %v496
      %502 = vmatpush.msra.mxu0 %v495
      %503 = vmatpush.msra.mxu0 %v494
      %504 = vmatpush.msra.mxu0 %v493
      %505 = vmatpush.msra.mxu0 %v492
      %506 = vmatpush.msra.mxu0 %v491
      %507 = vmatpush.msra.mxu0 %v490
      %508 = vmatpush.msra.mxu0 %v489
      %509 = vmatpush.msra.mxu0 %v488
      %510 = vmatpush.msra.mxu0 %v487
      %511 = vmatpush.msra.mxu0 %v486
      %512 = vmatpush.msra.mxu0 %v485
      %513 = vmatpush.msra.mxu0 %v484
      %514 = vmatpush.msra.mxu0 %v483
      %515 = vmatpush.msra.mxu0 %v482
      %516 = vmatpush.msra.mxu0 %v481
      %517 = vmatmul.f32.gmra.mxu0 %v477
      %v518 = vpop.f32.mrf.mxu0
      %v519 = vadd.f32 %v499, %v518
      %520 = vmatmul.f32.gmra.mxu0 %v478
      %v521 = vpop.f32.mrf.mxu0
      %v522 = vadd.f32 %v499, %v521
      %523 = vmatmul.f32.gmra.mxu0 %v479
      %v524 = vpop.f32.mrf.mxu0
      %v525 = vadd.f32 %v499, %v524
      %526 = vmatmul.f32.gmra.mxu0 %v480
      %v527 = vpop.f32.mrf.mxu0
      %v528 = vadd.f32 %v499, %v527
      %529 = vdwg.mxu0
      %v530 = vmax.f32 %v519, 0.0
      %v531 = vmax.f32 %v522, 0.0
      %v532 = vmax.f32 %v525, 0.0
      %v533 = vmax.f32 %v528, 0.0
      %v534 = vld [vmem:[%s6] sm:$0xff]
      %v535 = vld [vmem:[%s6 + $0x8] sm:$0xff]
      %v536 = vld [vmem:[%s6 + $0x10] sm:$0xff]
      %v537 = vld [vmem:[%s6 + $0x18] sm:$0xff]
      %v538 = vld [vmem:[%s6 + $0x20] sm:$0xff]
      %v539 = vld [vmem:[%s6 + $0x28] sm:$0xff]
      %v540 = vld [vmem:[%s6 + $0x30] sm:$0xff]
      %v541 = vld [vmem:[%s6 + $0x38] sm:$0xff]
      %v542 = vld [vmem:[%s6 + $0x40] sm:$0xff]
      %v543 = vld [vmem:[%s6 + $0x48] sm:$0xff]
      %v544 = vld [vmem:[%s6 + $0x50] sm:$0xff]
      %v545 = vld [vmem:[%s6 + $0x58] sm:$0xff]
      %v546 = vld [vmem:[%s6 + $0x60] sm:$0xff]
      %v547 = vld [vmem:[%s6 + $0x68] sm:$0xff]
      %v548 = vld [vmem:[%s6 + $0x70] sm:$0xff]
      %v549 = vld [vmem:[%s6 + $0x78] sm:$0xff]
      %v550 = vld [vmem:[%s7] sm:$0x1]
      %v552 = vperm.slane %v550, 0
      %554 = vmatpush.msra.mxu0 %v549
      %555 = vmatpush.msra.mxu0 %v548
      %556 = vmatpush.msra.mxu0 %v547
      %557 = vmatpush.msra.mxu0 %v546
      %558 = vmatpush.msra.mxu0 %v545
      %559 = vmatpush.msra.mxu0 %v544
      %560 = vmatpush.msra.mxu0 %v543
      %561 = vmatpush.msra.mxu0 %v542
      %562 = vmatpush.msra.mxu0 %v541
      %563 = vmatpush.msra.mxu0 %v540
      %564 = vmatpush.msra.mxu0 %v539
      %565 = vmatpush.msra.mxu0 %v538
      %566 = vmatpush.msra.mxu0 %v537
      %567 = vmatpush.msra.mxu0 %v536
      %568 = vmatpush.msra.mxu0 %v535
      %569 = vmatpush.msra.mxu0 %v534
      %570 = vmatmul.f32.gmra.mxu0 %v530
      %v571 = vpop.f32.mrf.mxu0
      %v572 = vadd.f32 %v552, %v571
      %573 = vmatmul.f32.gmra.mxu0 %v531
      %v574 = vpop.f32.mrf.mxu0
      %v575 = vadd.f32 %v552, %v574
      %576 = vmatmul.f32.gmra.mxu0 %v532
      %v577 = vpop.f32.mrf.mxu0
      %v578 = vadd.f32 %v552, %v577
      %579 = vmatmul.f32.gmra.mxu0 %v533
      %v580 = vpop.f32.mrf.mxu0
      %v581 = vadd.f32 %v552, %v580
      %582 = vdwg.mxu0
      %v583 = vmax.f32 %v572, 0.0
      %v584 = vmax.f32 %v575, 0.0
      %v585 = vmax.f32 %v578, 0.0
      %v586 = vmax.f32 %v581, 0.0
      %v587 = vld [vmem:[%s8] sm:$0xff]
      %v588 = vld [vmem:[%s8 + $0x8] sm:$0xff]
      %v589 = vld [vmem:[%s8 + $0x10] sm:$0xff]
      %v590 = vld [vmem:[%s8 + $0x18] sm:$0xff]
      %v591 = vld [vmem:[%s8 + $0x20] sm:$0xff]
      %v592 = vld [vmem:[%s8 + $0x28] sm:$0xff]
      %v593 = vld [vmem:[%s8 + $0x30] sm:$0xff]
      %v594 = vld [vmem:[%s8 + $0x38] sm:$0xff]
      %v595 = vld [vmem:[%s8 + $0x40] sm:$0xff]
      %v596 = vld [vmem:[%s8 + $0x48] sm:$0xff]
      %v597 = vld [vmem:[%s8 + $0x50] sm:$0xff]
      %v598 = vld [vmem:[%s8 + $0x58] sm:$0xff]
      %v599 = vld [vmem:[%s8 + $0x60] sm:$0xff]
      %v600 = vld [vmem:[%s8 + $0x68] sm:$0xff]
      %v601 = vld [vmem:[%s8 + $0x70] sm:$0xff]
      %v602 = vld [vmem:[%s8 + $0x78] sm:$0xff]
      %v603 = vld [vmem:[%s9] sm:$0x1]
      %v605 = vperm.slane %v603, 0
      %607 = vmatpush.msra.mxu0 %v602
      %608 = vmatpush.msra.mxu0 %v601
      %609 = vmatpush.msra.mxu0 %v600
      %610 = vmatpush.msra.mxu0 %v599
      %611 = vmatpush.msra.mxu0 %v598
      %612 = vmatpush.msra.mxu0 %v597
      %613 = vmatpush.msra.mxu0 %v596
      %614 = vmatpush.msra.mxu0 %v595
      %615 = vmatpush.msra.mxu0 %v594
      %616 = vmatpush.msra.mxu0 %v593
      %617 = vmatpush.msra.mxu0 %v592
      %618 = vmatpush.msra.mxu0 %v591
      %619 = vmatpush.msra.mxu0 %v590
      %620 = vmatpush.msra.mxu0 %v589
      %621 = vmatpush.msra.mxu0 %v588
      %622 = vmatpush.msra.mxu0 %v587
      %623 = vmatmul.f32.gmra.mxu0 %v583
      %v624 = vpop.f32.mrf.mxu0
      %v625 = vadd.f32 %v605, %v624
      %626 = vmatmul.f32.gmra.mxu0 %v584
      %v627 = vpop.f32.mrf.mxu0
      %v628 = vadd.f32 %v605, %v627
      %629 = vmatmul.f32.gmra.mxu0 %v585
      %v630 = vpop.f32.mrf.mxu0
      %v631 = vadd.f32 %v605, %v630
      %632 = vmatmul.f32.gmra.mxu0 %v586
      %v633 = vpop.f32.mrf.mxu0
      %v634 = vadd.f32 %v605, %v633
      %635 = vdwg.mxu0
      %v636 = vxor.u32 %v625, 2147483648
      %v637 = vxor.u32 %v628, 2147483648
      %v638 = vxor.u32 %v631, 2147483648
      %v639 = vxor.u32 %v634, 2147483648
      %v640 = vmul.f32 %v636, 1.442695
      %v641 = vpow.pop %v640
      %v642 = vmul.f32 %v637, 1.442695
      %v643 = vpow.pop %v642
      %v644 = vmul.f32 %v638, 1.442695
      %v645 = vpow.pop %v644
      %v646 = vmul.f32 %v639, 1.442695
      %v647 = vpow.pop %v646
      %v648 = vadd.f32 %v641, 1.0
      %v649 = vadd.f32 %v643, 1.0
      %v650 = vadd.f32 %v645, 1.0
      %v651 = vadd.f32 %v647, 1.0
      %v652 = vrcp.pop %v648
      %v653 = vmul.f32 %v648, %v652
      %v654 = vsub.f32 1.0, %v653
      %v655 = vmul.f32 %v652, %v654
      %v656 = vadd.f32 %v652, %v655
      %vm657 = vweird.f32 %v648
      %vm658 = vweird.f32 %v652
      %vm659 = vmor %vm657, %vm658
      %v660 = vsel %vm659, %v652, %v656
      %v661 = vand.u32 2147483647, %v648
      %vm662 = vcmp.eq.f32.partialorder %v661, 8.507059e+37
      %v663 = vand.u32 %v648, 2147483648
      %v664 = vor.u32 1.1754944e-38, %v663
      %v665 = vsel %vm662, %v664, %v660
      %v666 = vmul.f32 1.0, %v665
      %v667 = vrcp.pop %v649
      %v668 = vmul.f32 %v649, %v667
      %v669 = vsub.f32 1.0, %v668
      %v670 = vmul.f32 %v667, %v669
      %v671 = vadd.f32 %v667, %v670
      %vm672 = vweird.f32 %v649
      %vm673 = vweird.f32 %v667
      %vm674 = vmor %vm672, %vm673
      %v675 = vsel %vm674, %v667, %v671
      %v676 = vand.u32 2147483647, %v649
      %vm677 = vcmp.eq.f32.partialorder %v676, 8.507059e+37
      %v678 = vand.u32 %v649, 2147483648
      %v679 = vor.u32 1.1754944e-38, %v678
      %v680 = vsel %vm677, %v679, %v675
      %v681 = vmul.f32 1.0, %v680
      %v682 = vrcp.pop %v650
      %v683 = vmul.f32 %v650, %v682
      %v684 = vsub.f32 1.0, %v683
      %v685 = vmul.f32 %v682, %v684
      %v686 = vadd.f32 %v682, %v685
      %vm687 = vweird.f32 %v650
      %vm688 = vweird.f32 %v682
      %vm689 = vmor %vm687, %vm688
      %v690 = vsel %vm689, %v682, %v686
      %v691 = vand.u32 2147483647, %v650
      %vm692 = vcmp.eq.f32.partialorder %v691, 8.507059e+37
      %v693 = vand.u32 %v650, 2147483648
      %v694 = vor.u32 1.1754944e-38, %v693
      %v695 = vsel %vm692, %v694, %v690
      %v696 = vmul.f32 1.0, %v695
      %v697 = vrcp.pop %v651
      %v698 = vmul.f32 %v651, %v697
      %v699 = vsub.f32 1.0, %v698
      %v700 = vmul.f32 %v697, %v699
      %v701 = vadd.f32 %v697, %v700
      %vm702 = vweird.f32 %v651
      %vm703 = vweird.f32 %v697
      %vm704 = vmor %vm702, %vm703
      %v705 = vsel %vm704, %v697, %v701
      %v706 = vand.u32 2147483647, %v651
      %vm707 = vcmp.eq.f32.partialorder %v706, 8.507059e+37
      %v708 = vand.u32 %v651, 2147483648
      %v709 = vor.u32 1.1754944e-38, %v708
      %v710 = vsel %vm707, %v709, %v705
      %v711 = vmul.f32 1.0, %v710
      %v712 = vmul.f32 %v666, 1.442695
      %v713 = vpow.pop %v712
      %v714 = vmul.f32 %v681, 1.442695
      %v715 = vpow.pop %v714
      %v716 = vmul.f32 %v696, 1.442695
      %v717 = vpow.pop %v716
      %v718 = vmul.f32 %v711, 1.442695
      %v719 = vpow.pop %v718
      %v720 = vadd.f32 %v713, 1e-05
      %v721 = vadd.f32 %v715, 1e-05
      %v722 = vadd.f32 %v717, 1e-05
      %v723 = vadd.f32 %v719, 1e-05
      %v724 = vlog2.pop %v720
      %v725 = vmul.f32 %v724, 0.6931472
      %v726 = vlog2.pop %v721
      %v727 = vmul.f32 %v726, 0.6931472
      %v728 = vlog2.pop %v722
      %v729 = vmul.f32 %v728, 0.6931472
      %v730 = vlog2.pop %v723
      %v731 = vmul.f32 %v730, 0.6931472
      %v732 = vsel %vm435, %v725, 0.0
      %733 = vadd.xlane.f32.xlu0 %v732
      %v734 = vpop.xlane.xlu0 %733
      %v735 = vsel %vm435, %v727, 0.0
      %736 = vadd.xlane.f32.xlu0 %v735
      %v737 = vpop.xlane.xlu0 %736
      %v738 = vsel %vm435, %v729, 0.0
      %739 = vadd.xlane.f32.xlu0 %v738
      %v740 = vpop.xlane.xlu0 %739
      %v741 = vsel %vm435, %v731, 0.0
      %742 = vadd.xlane.f32.xlu0 %v741
      %v743 = vpop.xlane.xlu0 %742
      %v744 = vld [vmem:[%s406] sm:$0xff]
      %v745 = vld [vmem:[%s406 + $0x8] sm:$0xff]
      %v746 = vld [vmem:[%s406 + $0x10] sm:$0xff]
      %v747 = vld [vmem:[%s406 + $0x18] sm:$0xff]
      %v748 = vmul.f32 %v744, %v713
      %v749 = vmul.f32 %v745, %v715
      %v750 = vmul.f32 %v746, %v717
      %v751 = vmul.f32 %v747, %v719
      %756 = vrot.lane.b32.xlu0 %v666, 120
      %v757 = vpop.permute.xlu0 %756
      %758 = vrot.lane.b32.xlu0 %v681, 120
      %v759 = vpop.permute.xlu0 %758
      %760 = vrot.lane.b32.xlu0 %v696, 120
      %v761 = vpop.permute.xlu0 %760
      %762 = vrot.lane.b32.xlu0 %v711, 120
      %v763 = vpop.permute.xlu0 %762
      %v768 = vadd.f32 %v748, %v757
      %v769 = vadd.f32 %v749, %v759
      %v770 = vadd.f32 %v750, %v761
      %v771 = vadd.f32 %v751, %v763
      %vm772 = vcmask 7168
      %773 = vst.msk [vmem:[%s424] sm:$0xff] %vm772, %v734
      %774 = vst.msk [vmem:[%s424 + $0x8] sm:$0xff] %vm772, %v737
      %775 = vst.msk [vmem:[%s424 + $0x10] sm:$0xff] %vm772, %v740
      %776 = vst.msk [vmem:[%s424 + $0x18] sm:$0xff] %vm772, %v743
      %v777 = vld [vmem:[%s412] sm:$0xff]
      %v778 = vld [vmem:[%s412 + $0x8] sm:$0xff]
      %v779 = vld [vmem:[%s412 + $0x10] sm:$0xff]
      %v780 = vld [vmem:[%s412 + $0x18] sm:$0xff]
      %781 = vst.msk [vmem:[%s418] sm:$0xff] %vm435, %v768
      %782 = vst.msk [vmem:[%s418 + $0x8] sm:$0xff] %vm435, %v769
      %783 = vst.msk [vmem:[%s418 + $0x10] sm:$0xff] %vm435, %v770
      %784 = vst.msk [vmem:[%s418 + $0x18] sm:$0xff] %vm435, %v771
      %789 = vrot.lane.b32.xlu0 %v777, 8
      %v790 = vpop.permute.xlu0 %789
      %791 = vrot.lane.b32.xlu0 %v778, 8
      %v792 = vpop.permute.xlu0 %791
      %793 = vrot.lane.b32.xlu0 %v779, 8
      %v794 = vpop.permute.xlu0 %793
      %795 = vrot.lane.b32.xlu0 %v780, 8
      %v796 = vpop.permute.xlu0 %795
      %vm801 = vcmask 130112
      %802 = vst.msk [vmem:[%s418] sm:$0xff] %vm801, %v790
      %803 = vst.msk [vmem:[%s418 + $0x8] sm:$0xff] %vm801, %v792
      %804 = vst.msk [vmem:[%s418 + $0x10] sm:$0xff] %vm801, %v794
      %805 = vst.msk [vmem:[%s418 + $0x18] sm:$0xff] %vm801, %v796
      %s806 = smul.u32 4, %s23
      %p807 = scmp.lt.s32.totalorder %s806, 7
      %s808 = scalar_select %p807, %s806, 7
      %s809 = smul.addr %s808, 8
      %s810 = scalar_lea.vmem %s10, %s809
      %s811 = smul.u32 4, %s23
      %p812 = scmp.lt.s32.totalorder %s811, 7
      %s813 = scalar_select %p812, %s811, 7
      %s814 = smul.addr %s813, 8
      %s815 = scalar_lea.vmem %s11, %s814
      // Predicated region
      $region61: #{tpu_custom_call.1} parent=59 // pred_check
        %p816 = pneg %p261
      $region62: #{tpu_custom_call.1} parent=59 // pred_check_branch
        %818 = sbr.rel (%p816) target = $region64
      $region63: #{tpu_custom_call.1} parent=59 // pred_region
        %s819 = smul.u32 4, %s23
      $region64: #{tpu_custom_call.1} parent=59 // pred_fallthru
        _
      // Predicated region
      $region65: #{tpu_custom_call.1} parent=59 // pred_check
        %p820 = pneg %p287
      $region66: #{tpu_custom_call.1} parent=59 // pred_check_branch
        %822 = sbr.rel (%p820) target = $region68
      $region67: #{tpu_custom_call.1} parent=59 // pred_region
        %s823 = smul.u32 4, %s23
      $region68: #{tpu_custom_call.1} parent=59 // pred_fallthru
        _
    $region60: #{tpu_custom_call.1} parent=5 // pred_fallthru
      _
    %p824 = scmp.le.s32.totalorder 2, %s18
    // Predicated region
    $region69: #{tpu_custom_call.1} parent=5 // pred_check
      %p825 = pneg %p824
    $region70: #{tpu_custom_call.1} parent=5 // pred_check_branch
      %827 = sbr.rel (%p825) target = $region72
    $region71: #{tpu_custom_call.1} parent=5 // pred_region
      %s828 = ssub.s32 %s18, 2
      // Predicated region
      $region73: #{tpu_custom_call.1} parent=71 // pred_check
        %p829 = pneg %p267
      $region74: #{tpu_custom_call.1} parent=71 // pred_check_branch
        %831 = sbr.rel (%p829) target = $region76
      $region75: #{tpu_custom_call.1} parent=71 // pred_region
        %s832 = smul.u32 4, %s24
        %p833 = scmp.lt.s32.totalorder %s832, 7
        %s834 = scalar_select %p833, %s832, 7
        %s835 = smul.addr %s834, 8
        %s836 = scalar_lea.vmem %s10, %s835
      $region76: #{tpu_custom_call.1} parent=71 // pred_fallthru
        _
      // Predicated region
      $region77: #{tpu_custom_call.1} parent=71 // pred_check
        %p837 = pneg %p293
      $region78: #{tpu_custom_call.1} parent=71 // pred_check_branch
        %839 = sbr.rel (%p837) target = $region80
      $region79: #{tpu_custom_call.1} parent=71 // pred_region
        %s840 = smul.u32 4, %s24
        %p841 = scmp.lt.s32.totalorder %s840, 7
        %s842 = scalar_select %p841, %s840, 7
        %s843 = smul.addr %s842, 8
        %s844 = scalar_lea.vmem %s11, %s843
      $region80: #{tpu_custom_call.1} parent=71 // pred_fallthru
        _
    $region72: #{tpu_custom_call.1} parent=5 // pred_fallthru
      _
  $region6: #{tpu_custom_call.1} parent=0 // loop_footer
    %s22 = sadd.s32 1, %s18
  $region7: #{tpu_custom_call.1} parent=0 // loop_footer_branch
    %17 = sbr.rel target = $region3
  $region8: #{tpu_custom_call.1} parent=0 // loop_exit
    _

</llo_original>
